<compile_context>
chip_gen: v7x
topology: tpu7x:2x2x1
jax: 0.10.0
libtpu: 0.0.40
codegen_flags: <defaults>
</compile_context>

<pallas_src>
import jax
import jax.numpy as jnp
from jax.experimental import pallas as pl
from jax.experimental.pallas import tpu as pltpu


def _round_up(x, m):
    return ((x + m - 1) // m) * m


def _choose_tile(batch, tile_b, min_steps=2):
    """Pick a 128-aligned batch tile; prefer >= min_steps grid steps (megacore)."""
    b128 = _round_up(batch, 128)
    tb = _round_up(min(tile_b, b128), 128)
    if (b128 // tb) < min_steps and b128 >= min_steps * 128:
        tb = _round_up(-(-b128 // min_steps), 128)   # ceil-div, re-aligned to 128
    b_pad = _round_up(batch, tb)
    return tb, b_pad


def mlp_qvalue_kernel(
    obsT_ref,           # (obs_dim, TILE_B) bf16  obs^T   (batch on lanes)
    actT_ref,           # (act_dim, TILE_B) bf16  action^T
    w1oT_ref,           # (H, obs_dim) bf16       W1[:obs_dim]^T
    w1aT_ref,           # (H, act_dim) bf16       W1[obs_dim:]^T
    b1_ref,             # (H, 1) f32
    w2T_ref,            # (H, H) bf16
    b2_ref,             # (H, 1) f32
    wv_ref,             # (H, 1) f32              value-head weights (VPU path)
    bv_ref,             # (1, 1) f32
    out_ref,            # (1, TILE_B) f32         lane-dense q^T
):
    # Layer 1 (concat-free): two partial matmuls into one fp32 accumulator.
    h = jnp.dot(w1oT_ref[...], obsT_ref[...], preferred_element_type=jnp.float32)
    h = h + jnp.dot(w1aT_ref[...], actT_ref[...], preferred_element_type=jnp.float32)
    h = jnp.maximum(h + b1_ref[...], 0.0).astype(jnp.bfloat16)

    # Layer 2: W2^T @ h + b2, ReLU -> (H, TILE_B), kept in fp32.
    h = jnp.dot(w2T_ref[...], h, preferred_element_type=jnp.float32)
    h = jnp.maximum(h + b2_ref[...], 0.0)

    # Value head (out_features = 1) on the VPU/XLU instead of a wasteful M=1 MXU
    # matmul: broadcast wv over lanes, multiply, sublane-reduce the H rows.
    q = jnp.sum(h * wv_ref[...], axis=0, keepdims=True) + bv_ref[...]
    out_ref[...] = q.astype(out_ref.dtype)


def prepare_qvalue_params(params, obs_dim):
    """One-time prep: split/transpose bf16 weights, fp32 column biases.

    Hoisted out of the forward pass so the per-call work is only the activation
    stream (cast/transpose/pad of obs & action).
    """
    w1, b1, w2, b2, wv, bv = params
    hidden = w1.shape[1]
    w1oT = w1[:obs_dim].T.astype(jnp.bfloat16)        # (H, obs_dim)
    w1aT = w1[obs_dim:].T.astype(jnp.bfloat16)        # (H, act_dim)
    b1c = b1.reshape(hidden, 1).astype(jnp.float32)
    w2T = w2.T.astype(jnp.bfloat16)                   # (H, H)
    b2c = b2.reshape(hidden, 1).astype(jnp.float32)
    wvc = wv.reshape(hidden, 1).astype(jnp.float32)   # stays f32: VPU value head
    bvc = bv.reshape(1, 1).astype(jnp.float32)
    return (w1oT, w1aT, b1c, w2T, b2c, wvc, bvc)


def mlp_qvalue_forward(obs, action, prepared, tile_b=8192):
    """MLPQValue forward: obs (B, obs_dim), action (B, act_dim) -> q (B,)."""
    B, obs_dim = obs.shape
    act_dim = action.shape[1]
    w1oT, w1aT, b1c, w2T, b2c, wvc, bvc = prepared
    hidden = w1oT.shape[0]

    tb, b_pad = _choose_tile(B, tile_b)

    # bf16 first (halves transpose bytes), then put batch on the lane axis and
    # pad the lane axis to a tile multiple (padded lanes are sliced off below).
    obsT = jnp.pad(obs.astype(jnp.bfloat16).T, ((0, 0), (0, b_pad - B)))
    actT = jnp.pad(action.astype(jnp.bfloat16).T, ((0, 0), (0, b_pad - B)))

    grid = (b_pad // tb,)

    out = pl.pallas_call(
        mlp_qvalue_kernel,
        out_shape=jax.ShapeDtypeStruct((1, b_pad), jnp.float32),
        grid=grid,
        in_specs=[
            pl.BlockSpec((obs_dim, tb), lambda i: (0, i)),       # obs^T: tiled over batch
            pl.BlockSpec((act_dim, tb), lambda i: (0, i)),       # act^T: tiled over batch
            pl.BlockSpec((hidden, obs_dim), lambda i: (0, 0)),   # weights/biases: resident
            pl.BlockSpec((hidden, act_dim), lambda i: (0, 0)),
            pl.BlockSpec((hidden, 1), lambda i: (0, 0)),
            pl.BlockSpec((hidden, hidden), lambda i: (0, 0)),
            pl.BlockSpec((hidden, 1), lambda i: (0, 0)),
            pl.BlockSpec((hidden, 1), lambda i: (0, 0)),
            pl.BlockSpec((1, 1), lambda i: (0, 0)),
        ],
        out_specs=pl.BlockSpec((1, tb), lambda i: (0, i)),       # lane-dense output
        compiler_params=pltpu.CompilerParams(
            dimension_semantics=("parallel",),                   # v7x: 2 TCs share batch
        ),
    )(obsT, actT, w1oT, w1aT, b1c, w2T, b2c, wvc, bvc)

    return out[0, :B]


def init_params(key, obs_dim, act_dim, hidden):
    """Deterministic PyTorch-Linear-style init (uniform +-1/sqrt(fan_in))."""
    in_dim = obs_dim + act_dim
    ks = jax.random.split(key, 6)

    def unif(k, shape, fan_in):
        bound = 1.0 / jnp.sqrt(jnp.float32(fan_in))
        return jax.random.uniform(k, shape, jnp.float32, -bound, bound)

    w1 = unif(ks[0], (in_dim, hidden), in_dim)
    b1 = unif(ks[1], (hidden,), in_dim)
    w2 = unif(ks[2], (hidden, hidden), hidden)
    b2 = unif(ks[3], (hidden,), hidden)
    wv = unif(ks[4], (hidden, 1), hidden)
    bv = unif(ks[5], (1,), hidden)
    return (w1, b1, w2, b2, wv, bv)


def reference_forward(obs, action, params):
    """Pure-JAX fp32 reference (mirrors the PyTorch module)."""
    w1, b1, w2, b2, wv, bv = params
    x = jnp.concatenate([obs, action], axis=-1)
    h = jax.nn.relu(x @ w1 + b1)
    h = jax.nn.relu(h @ w2 + b2)
    return (h @ wv + bv).squeeze(-1)


if __name__ == "__main__":
    key = jax.random.PRNGKey(0)
    k_obs, k_act, k_params = jax.random.split(key, 3)

    B, OBS_DIM, ACT_DIM, HIDDEN = 8, 6, 3, 32

    obs = jax.random.normal(k_obs, (B, OBS_DIM), jnp.float32)
    action = jax.random.normal(k_act, (B, ACT_DIM), jnp.float32)
    params = init_params(k_params, OBS_DIM, ACT_DIM, HIDDEN)

    # Weight prep is done once (hoisted out of the per-call forward).
    prepared = prepare_qvalue_params(params, OBS_DIM)

    q = mlp_qvalue_forward(obs, action, prepared)
    q = jax.block_until_ready(q)

    q_ref = reference_forward(obs, action, params)
    assert q.shape == (B,), q.shape
    # bf16 weights/activations with fp32 accumulation -> loose-ish tolerance vs fp32 ref.
    assert jnp.allclose(q, q_ref, atol=5e-2, rtol=5e-2), (q, q_ref)

    print("KERNEL_OK")
</pallas_src>

<mosaic_0001>
module attributes {stable_mosaic.version = 11 : i64} {
  func.func @mlp_qvalue_kernel(%arg0: i32, %arg1: memref<6x128xbf16, #tpu.memory_space<vmem>>, %arg2: memref<3x128xbf16, #tpu.memory_space<vmem>>, %arg3: memref<32x6xbf16, #tpu.memory_space<vmem>>, %arg4: memref<32x3xbf16, #tpu.memory_space<vmem>>, %arg5: memref<32x1xf32, #tpu.memory_space<vmem>>, %arg6: memref<32x32xbf16, #tpu.memory_space<vmem>>, %arg7: memref<32x1xf32, #tpu.memory_space<vmem>>, %arg8: memref<32x1xf32, #tpu.memory_space<vmem>>, %arg9: memref<1x1xf32, #tpu.memory_space<vmem>>, %arg10: memref<1x128xf32, #tpu.memory_space<vmem>>) attributes {dimension_semantics = [#tpu.dimension_semantics<parallel>], iteration_bounds = array<i64: 1>, scalar_prefetch = 0 : i64, scratch_operands = 0 : i64, tpu.core_type = #tpu.core_type<tc>, window_params = [{transform_indices = @transform_0, window_bounds = array<i64: 6, 128>}, {transform_indices = @transform_1, window_bounds = array<i64: 3, 128>}, {pipeline_mode = #tpu.pipeline_mode<synchronous>, transform_indices = @transform_2, window_bounds = array<i64: 32, 6>}, {pipeline_mode = #tpu.pipeline_mode<synchronous>, transform_indices = @transform_3, window_bounds = array<i64: 32, 3>}, {pipeline_mode = #tpu.pipeline_mode<synchronous>, transform_indices = @transform_4, window_bounds = array<i64: 32, 1>}, {pipeline_mode = #tpu.pipeline_mode<synchronous>, transform_indices = @transform_5, window_bounds = array<i64: 32, 32>}, {pipeline_mode = #tpu.pipeline_mode<synchronous>, transform_indices = @transform_6, window_bounds = array<i64: 32, 1>}, {pipeline_mode = #tpu.pipeline_mode<synchronous>, transform_indices = @transform_7, window_bounds = array<i64: 32, 1>}, {pipeline_mode = #tpu.pipeline_mode<synchronous>, transform_indices = @transform_8, window_bounds = array<i64: 1, 1>}, {transform_indices = @transform_9, window_bounds = array<i64: 1, 128>}]} {
    %c0 = arith.constant 0 : index
    %c0_0 = arith.constant 0 : index
    %0 = vector.load %arg3[%c0, %c0_0] : memref<32x6xbf16, #tpu.memory_space<vmem>>, vector<32x6xbf16>
    %c0_1 = arith.constant 0 : index
    %c0_2 = arith.constant 0 : index
    %1 = vector.load %arg1[%c0_1, %c0_2] : memref<6x128xbf16, #tpu.memory_space<vmem>>, vector<6x128xbf16>
    %cst = arith.constant dense<0.000000e+00> : vector<32x128xf32>
    %2 = tpu.matmul %0, %1, %cst {dimension_numbers = #tpu.dot_dimension_numbers<[1], [0], [0], [1], [0, 0, 1, 1], [], []>} : vector<32x6xbf16>, vector<6x128xbf16>, vector<32x128xf32> -> vector<32x128xf32>
    %c0_3 = arith.constant 0 : index
    %c0_4 = arith.constant 0 : index
    %3 = vector.load %arg4[%c0_3, %c0_4] : memref<32x3xbf16, #tpu.memory_space<vmem>>, vector<32x3xbf16>
    %c0_5 = arith.constant 0 : index
    %c0_6 = arith.constant 0 : index
    %4 = vector.load %arg2[%c0_5, %c0_6] : memref<3x128xbf16, #tpu.memory_space<vmem>>, vector<3x128xbf16>
    %cst_7 = arith.constant dense<0.000000e+00> : vector<32x128xf32>
    %5 = tpu.matmul %3, %4, %cst_7 {dimension_numbers = #tpu.dot_dimension_numbers<[1], [0], [0], [1], [0, 0, 1, 1], [], []>} : vector<32x3xbf16>, vector<3x128xbf16>, vector<32x128xf32> -> vector<32x128xf32>
    %6 = arith.addf %2, %5 : vector<32x128xf32>
    %c0_8 = arith.constant 0 : index
    %c0_9 = arith.constant 0 : index
    %7 = vector.load %arg5[%c0_8, %c0_9] : memref<32x1xf32, #tpu.memory_space<vmem>>, vector<32x1xf32>
    %8 = vector.broadcast %7 : vector<32x1xf32> to vector<32x128xf32>
    %9 = arith.addf %6, %8 : vector<32x128xf32>
    %cst_10 = arith.constant 0.000000e+00 : f32
    %10 = vector.broadcast %cst_10 : f32 to vector<32x128xf32>
    %11 = arith.maximumf %9, %10 : vector<32x128xf32>
    %12 = arith.truncf %11 : vector<32x128xf32> to vector<32x128xbf16>
    %c0_11 = arith.constant 0 : index
    %c0_12 = arith.constant 0 : index
    %13 = vector.load %arg6[%c0_11, %c0_12] : memref<32x32xbf16, #tpu.memory_space<vmem>>, vector<32x32xbf16>
    %cst_13 = arith.constant dense<0.000000e+00> : vector<32x128xf32>
    %14 = tpu.matmul %13, %12, %cst_13 {dimension_numbers = #tpu.dot_dimension_numbers<[1], [0], [0], [1], [0, 0, 1, 1], [], []>} : vector<32x32xbf16>, vector<32x128xbf16>, vector<32x128xf32> -> vector<32x128xf32>
    %c0_14 = arith.constant 0 : index
    %c0_15 = arith.constant 0 : index
    %15 = vector.load %arg7[%c0_14, %c0_15] : memref<32x1xf32, #tpu.memory_space<vmem>>, vector<32x1xf32>
    %16 = vector.broadcast %15 : vector<32x1xf32> to vector<32x128xf32>
    %17 = arith.addf %14, %16 : vector<32x128xf32>
    %cst_16 = arith.constant 0.000000e+00 : f32
    %18 = vector.broadcast %cst_16 : f32 to vector<32x128xf32>
    %19 = arith.maximumf %17, %18 : vector<32x128xf32>
    %c0_17 = arith.constant 0 : index
    %c0_18 = arith.constant 0 : index
    %20 = vector.load %arg8[%c0_17, %c0_18] : memref<32x1xf32, #tpu.memory_space<vmem>>, vector<32x1xf32>
    %21 = vector.broadcast %20 : vector<32x1xf32> to vector<32x128xf32>
    %22 = arith.mulf %19, %21 : vector<32x128xf32>
    %cst_19 = arith.constant dense<0.000000e+00> : vector<128xf32>
    %23 = vector.multi_reduction <add>, %22, %cst_19 [0] : vector<32x128xf32> to vector<128xf32>
    %24 = vector.shape_cast %23 : vector<128xf32> to vector<1x128xf32>
    %c0_20 = arith.constant 0 : index
    %c0_21 = arith.constant 0 : index
    %25 = vector.load %arg9[%c0_20, %c0_21] : memref<1x1xf32, #tpu.memory_space<vmem>>, vector<1x1xf32>
    %26 = vector.broadcast %25 : vector<1x1xf32> to vector<1x128xf32>
    %27 = arith.addf %24, %26 : vector<1x128xf32>
    %c0_22 = arith.constant 0 : index
    %c0_23 = arith.constant 0 : index
    %28 = vector.load %arg10[%c0_22, %c0_23] : memref<1x128xf32, #tpu.memory_space<vmem>>, vector<1x128xf32>
    tpu.vector_store %arg10[%c0_22, %c0_23], %27 {strides = array<i32>} : memref<1x128xf32, #tpu.memory_space<vmem>>, vector<1x128xf32>,
    return
  }
  func.func @transform_0(%arg0: i32) -> (i32, i32) {
    %c0_i32 = arith.constant 0 : i32
    %c0_i32_0 = arith.constant 0 : i32
    return %c0_i32, %arg0 : i32, i32
  }
  func.func @transform_1(%arg0: i32) -> (i32, i32) {
    %c0_i32 = arith.constant 0 : i32
    %c0_i32_0 = arith.constant 0 : i32
    return %c0_i32, %arg0 : i32, i32
  }
  func.func @transform_2(%arg0: i32) -> (i32, i32) {
    %c0_i32 = arith.constant 0 : i32
    %c0_i32_0 = arith.constant 0 : i32
    %c0_i32_1 = arith.constant 0 : i32
    return %c0_i32, %c0_i32_0 : i32, i32
  }
  func.func @transform_3(%arg0: i32) -> (i32, i32) {
    %c0_i32 = arith.constant 0 : i32
    %c0_i32_0 = arith.constant 0 : i32
    %c0_i32_1 = arith.constant 0 : i32
    return %c0_i32, %c0_i32_0 : i32, i32
  }
  func.func @transform_4(%arg0: i32) -> (i32, i32) {
    %c0_i32 = arith.constant 0 : i32
    %c0_i32_0 = arith.constant 0 : i32
    %c0_i32_1 = arith.constant 0 : i32
    return %c0_i32, %c0_i32_0 : i32, i32
  }
  func.func @transform_5(%arg0: i32) -> (i32, i32) {
    %c0_i32 = arith.constant 0 : i32
    %c0_i32_0 = arith.constant 0 : i32
    %c0_i32_1 = arith.constant 0 : i32
    return %c0_i32, %c0_i32_0 : i32, i32
  }
  func.func @transform_6(%arg0: i32) -> (i32, i32) {
    %c0_i32 = arith.constant 0 : i32
    %c0_i32_0 = arith.constant 0 : i32
    %c0_i32_1 = arith.constant 0 : i32
    return %c0_i32, %c0_i32_0 : i32, i32
  }
  func.func @transform_7(%arg0: i32) -> (i32, i32) {
    %c0_i32 = arith.constant 0 : i32
    %c0_i32_0 = arith.constant 0 : i32
    %c0_i32_1 = arith.constant 0 : i32
    return %c0_i32, %c0_i32_0 : i32, i32
  }
  func.func @transform_8(%arg0: i32) -> (i32, i32) {
    %c0_i32 = arith.constant 0 : i32
    %c0_i32_0 = arith.constant 0 : i32
    %c0_i32_1 = arith.constant 0 : i32
    return %c0_i32, %c0_i32_0 : i32, i32
  }
  func.func @transform_9(%arg0: i32) -> (i32, i32) {
    %c0_i32 = arith.constant 0 : i32
    %c0_i32_0 = arith.constant 0 : i32
    return %c0_i32, %arg0 : i32, i32
  }
}

</mosaic_0001>

<llo_original>
// kernel: tpu_custom_call.1
$region0: #{tpu_custom_call.1}
  #allocation0 [shape = 'u32[]', space=smem, size = 0x4, offset = 0x4, fixed_abs, tag = 'smem constant byte address 0x4 - core index']
  #allocation1 [shape = 'u32[144,128]{1,0:T(1,128)}', space=vmem, size = 0x12000, scoped, tag = 'internal scratch']
  #allocation2 [shape = 'f32[1,1]{1,0:T(1,128)S(1)}', space=vmem, size = 0x200, scoped, tag = 'scoped memory for tpu_custom_call.1']
  %s0 = inlined_call_operand.vmem [shape: bf16[6,128], index: 0, kind: input, shape index: {}]
  %s1 = inlined_call_operand.vmem [shape: bf16[3,128], index: 1, kind: input, shape index: {}]
  %s2 = inlined_call_operand.vmem [shape: bf16[32,6], index: 2, kind: input, shape index: {}]
  %s3 = inlined_call_operand.vmem [shape: bf16[32,3], index: 3, kind: input, shape index: {}]
  %s4 = inlined_call_operand.vmem [shape: f32[32,1], index: 4, kind: input, shape index: {}]
  %s5 = inlined_call_operand.vmem [shape: bf16[32,32], index: 5, kind: input, shape index: {}]
  %s6 = inlined_call_operand.vmem [shape: f32[32,1], index: 6, kind: input, shape index: {}]
  %s7 = inlined_call_operand.vmem [shape: f32[32,1], index: 7, kind: input, shape index: {}]
  %s8 = inlined_call_operand.<no memory space> [shape: f32[1,1], index: 8, kind: input, shape index: {}]
  %s9 = inlined_call_operand.hbm [shape: f32[1,128], index: 9, kind: output, shape index: {}]
  %s10 = sld [smem:[#allocation0]]
  $region46: #{tpu_custom_call.1} parent=0
    _
  %s12 = ssub.s32 1, %s10
  %s13 = scalar_select 0, %s12, %s10
  %v14 = vstv %s8
  %15 = vst [vmem:[#allocation2] sm:$0x1] %v14
  $region1: #{tpu_custom_call.1} parent=0
    #allocation3 [shape = 'u8[512]{0}', space=vmem, size = 0x400, scoped, tag = 'output window, operand 0, single buffered']
    #allocation4 [shape = 's32[1]{0}', space=sflag, size = 0x4, scoped, tag = 'scoped memory for tpu_custom_call.1']
    %16 = vsyncpa [#allocation4], 0
    // Predicated region
    $region2: #{tpu_custom_call.1} parent=1 // pred_check
      _
    $region3: #{tpu_custom_call.1} parent=1 // pred_check_branch
      %18 = sbr.rel (0) target = $region5
    $region4: #{tpu_custom_call.1} parent=1 // pred_region
      _
    $region5: #{tpu_custom_call.1} parent=1 // pred_fallthru
      _
    // Predicated region
    $region6: #{tpu_custom_call.1} parent=1 // pred_check
      _
    $region7: #{tpu_custom_call.1} parent=1 // pred_check_branch
      %20 = sbr.rel (0) target = $region9
    $region8: #{tpu_custom_call.1} parent=1 // pred_region
      _
    $region9: #{tpu_custom_call.1} parent=1 // pred_fallthru
      _
    // Predicated region
    $region10: #{tpu_custom_call.1} parent=1 // pred_check
      _
    $region11: #{tpu_custom_call.1} parent=1 // pred_check_branch
      %22 = sbr.rel (0) target = $region13
    $region12: #{tpu_custom_call.1} parent=1 // pred_region
      _
    $region13: #{tpu_custom_call.1} parent=1 // pred_fallthru
      _
    // Predicated region
    $region14: #{tpu_custom_call.1} parent=1 // pred_check
      _
    $region15: #{tpu_custom_call.1} parent=1 // pred_check_branch
      %24 = sbr.rel (0) target = $region17
    $region16: #{tpu_custom_call.1} parent=1 // pred_region
      _
    $region17: #{tpu_custom_call.1} parent=1 // pred_fallthru
      _
    // Predicated region
    $region18: #{tpu_custom_call.1} parent=1 // pred_check
      _
    $region19: #{tpu_custom_call.1} parent=1 // pred_check_branch
      %26 = sbr.rel (0) target = $region21
    $region20: #{tpu_custom_call.1} parent=1 // pred_region
      _
    $region21: #{tpu_custom_call.1} parent=1 // pred_fallthru
      _
    // Predicated region
    $region22: #{tpu_custom_call.1} parent=1 // pred_check
      _
    $region23: #{tpu_custom_call.1} parent=1 // pred_check_branch
      %28 = sbr.rel (0) target = $region25
    $region24: #{tpu_custom_call.1} parent=1 // pred_region
      _
    $region25: #{tpu_custom_call.1} parent=1 // pred_fallthru
      _
    // Predicated region
    $region26: #{tpu_custom_call.1} parent=1 // pred_check
      _
    $region27: #{tpu_custom_call.1} parent=1 // pred_check_branch
      %30 = sbr.rel (0) target = $region29
    $region28: #{tpu_custom_call.1} parent=1 // pred_region
      _
    $region29: #{tpu_custom_call.1} parent=1 // pred_fallthru
      _
    // Predicated region
    $region30: #{tpu_custom_call.1} parent=1 // pred_check
      _
    $region31: #{tpu_custom_call.1} parent=1 // pred_check_branch
      %32 = sbr.rel (0) target = $region33
    $region32: #{tpu_custom_call.1} parent=1 // pred_region
      _
    $region33: #{tpu_custom_call.1} parent=1 // pred_fallthru
      _
    // Predicated region
    $region34: #{tpu_custom_call.1} parent=1 // pred_check
      _
    $region35: #{tpu_custom_call.1} parent=1 // pred_check_branch
      %34 = sbr.rel (0) target = $region37
    $region36: #{tpu_custom_call.1} parent=1 // pred_region
      _
    $region37: #{tpu_custom_call.1} parent=1 // pred_fallthru
      _
    %v36 = vld [vmem:[%s2] sm:$0xf]
    %v37 = vld [vmem:[%s2 + $0x4] sm:$0xf]
    %v38 = vld [vmem:[%s2 + $0x8] sm:$0xf]
    %v39 = vld [vmem:[%s2 + $0xc] sm:$0xf]
    %v40 = vld [vmem:[%s0] sm:$0x7]
    %v41 = vld [vmem:[%s3] sm:$0xf]
    %v42 = vld [vmem:[%s3 + $0x4] sm:$0xf]
    %v43 = vld [vmem:[%s3 + $0x8] sm:$0xf]
    %v44 = vld [vmem:[%s3 + $0xc] sm:$0xf]
    %v45 = vld [vmem:[%s1] sm:$0x3]
    %v50 = vunpack.c.l.b16 %v41
    %v51 = vunpack.c.l.b16 %v42
    %v52 = vunpack.c.l.b16 %v43
    %v53 = vunpack.c.l.b16 %v44
    %v54 = vpack.c.b16 %v51, %v50
    %v55 = vpack.c.b16 %v53, %v52
    %vm56 = vcmask 23552
    %v58 = vsel %vm56, %v54, 0
    %v61 = vsel %vm56, %v55, 0
    %vm63 = vcmask 1040384
    %vm64 = vcmask 1041408
    %v65 = vsel %vm63, 4294967295, 65535
    %v66 = vsel %vm64, %v65, 0
    %v68 = vand.u32 %v45, %v66
    %70 = vmatprep.subr.bf16.mxu0 0
    %71 = vmatpush1.bf16.msra.mxu0 %v68
    %72 = vmatprep.subr.bf16.mxu0 0
    %73 = vmatpush1.bf16.msra.mxu0 0
    %74 = vmatprep.subr.bf16.mxu0 0
    %75 = vmatpush1.bf16.msra.mxu0 0
    %76 = vmatprep.subr.bf16.mxu0 0
    %77 = vmatpush1.bf16.msra.mxu0 0
    %78 = vmatprep.subr.bf16.mxu0 0
    %79 = vmatpush1.bf16.msra.mxu0 0
    %80 = vmatprep.subr.bf16.mxu0 0
    %81 = vmatpush1.bf16.msra.mxu0 0
    %82 = vmatprep.subr.bf16.mxu0 0
    %83 = vmatpush1.bf16.msra.mxu0 0
    %84 = vmatprep.subr.bf16.mxu0 0
    %85 = vmatpush1.bf16.msra.mxu0 0
    %86 = vmatprep.subr.bf16.mxu0 0
    %87 = vmatpush1.bf16.msra.mxu0 0
    %88 = vmatprep.subr.bf16.mxu0 0
    %89 = vmatpush1.bf16.msra.mxu0 0
    %90 = vmatprep.subr.bf16.mxu0 0
    %91 = vmatpush1.bf16.msra.mxu0 0
    %92 = vmatprep.subr.bf16.mxu0 0
    %93 = vmatpush1.bf16.msra.mxu0 0
    %94 = vmatprep.subr.bf16.mxu0 0
    %95 = vmatpush1.bf16.msra.mxu0 0
    %96 = vmatprep.subr.bf16.mxu0 0
    %97 = vmatpush1.bf16.msra.mxu0 0
    %98 = vmatprep.subr.bf16.mxu0 0
    %99 = vmatpush1.bf16.msra.mxu0 0
    %100 = vmatprep.subr.bf16.mxu0 0
    %101 = vmatpush1.bf16.msra.mxu0 0
    %102 = vmatprep.mubr.bf16.mxu0 0
    %103 = vmatmul.mubr.bf16.gmra.mrb[0].mxu0 %v58
    %v104 = vpop.f32.mrb[0].mxu0
    %v105 = vadd.f32 0.0, %v104
    %v106 = vpop.f32.mrb[0].mxu0
    %v107 = vpop.f32.mrb[0].mxu0
    %v108 = vadd.f32 0.0, %v107
    %v109 = vpop.f32.mrb[0].mxu0
    %110 = vmatprep.mubr.bf16.mxu0 0
    %111 = vmatmul.mubr.bf16.gmra.mrb[0].mxu0 %v61
    %v112 = vpop.f32.mrb[0].mxu0
    %v113 = vadd.f32 0.0, %v112
    %v114 = vpop.f32.mrb[0].mxu0
    %v115 = vpop.f32.mrb[0].mxu0
    %v116 = vadd.f32 0.0, %v115
    %v117 = vpop.f32.mrb[0].mxu0
    %118 = vdwg.mxu0
    %v123 = vunpack.c.l.b16 %v36
    %v124 = vunpack.c.l.b16 %v37
    %v125 = vunpack.c.l.b16 %v38
    %v126 = vunpack.c.l.b16 %v39
    %v127 = vpack.c.b16 %v124, %v123
    %v128 = vpack.c.b16 %v126, %v125
    %vm129 = vcmask 48128
    %v131 = vsel %vm129, %v127, 0
    %v134 = vsel %vm129, %v128, 0
    %vm136 = vcmask 1042432
    %v138 = vsel %vm136, %v40, 0
    %140 = vmatprep.subr.bf16.mxu0 0
    %141 = vmatpush1.bf16.msra.mxu0 %v138
    %142 = vmatprep.subr.bf16.mxu0 0
    %143 = vmatpush1.bf16.msra.mxu0 0
    %144 = vmatprep.subr.bf16.mxu0 0
    %145 = vmatpush1.bf16.msra.mxu0 0
    %146 = vmatprep.subr.bf16.mxu0 0
    %147 = vmatpush1.bf16.msra.mxu0 0
    %148 = vmatprep.subr.bf16.mxu0 0
    %149 = vmatpush1.bf16.msra.mxu0 0
    %150 = vmatprep.subr.bf16.mxu0 0
    %151 = vmatpush1.bf16.msra.mxu0 0
    %152 = vmatprep.subr.bf16.mxu0 0
    %153 = vmatpush1.bf16.msra.mxu0 0
    %154 = vmatprep.subr.bf16.mxu0 0
    %155 = vmatpush1.bf16.msra.mxu0 0
    %156 = vmatprep.subr.bf16.mxu0 0
    %157 = vmatpush1.bf16.msra.mxu0 0
    %158 = vmatprep.subr.bf16.mxu0 0
    %159 = vmatpush1.bf16.msra.mxu0 0
    %160 = vmatprep.subr.bf16.mxu0 0
    %161 = vmatpush1.bf16.msra.mxu0 0
    %162 = vmatprep.subr.bf16.mxu0 0
    %163 = vmatpush1.bf16.msra.mxu0 0
    %164 = vmatprep.subr.bf16.mxu0 0
    %165 = vmatpush1.bf16.msra.mxu0 0
    %166 = vmatprep.subr.bf16.mxu0 0
    %167 = vmatpush1.bf16.msra.mxu0 0
    %168 = vmatprep.subr.bf16.mxu0 0
    %169 = vmatpush1.bf16.msra.mxu0 0
    %170 = vmatprep.subr.bf16.mxu0 0
    %171 = vmatpush1.bf16.msra.mxu0 0
    %172 = vmatprep.mubr.bf16.mxu0 0
    %173 = vmatmul.mubr.bf16.gmra.mrb[0].mxu0 %v131
    %v174 = vpop.f32.mrb[0].mxu0
    %v175 = vadd.f32 %v105, %v174
    %v176 = vpop.f32.mrb[0].mxu0
    %v177 = vpop.f32.mrb[0].mxu0
    %v178 = vadd.f32 %v108, %v177
    %v179 = vpop.f32.mrb[0].mxu0
    %180 = vmatprep.mubr.bf16.mxu0 0
    %181 = vmatmul.mubr.bf16.gmra.mrb[0].mxu0 %v134
    %v182 = vpop.f32.mrb[0].mxu0
    %v183 = vadd.f32 %v113, %v182
    %v184 = vpop.f32.mrb[0].mxu0
    %v185 = vpop.f32.mrb[0].mxu0
    %v186 = vadd.f32 %v116, %v185
    %v187 = vpop.f32.mrb[0].mxu0
    %188 = vdwg.mxu0
    %v189 = vld [vmem:[%s4] sm:$0xff]
    %v190 = vld [vmem:[%s4 + $0x8] sm:$0xff]
    %v191 = vld [vmem:[%s4 + $0x10] sm:$0xff]
    %v192 = vld [vmem:[%s4 + $0x18] sm:$0xff]
    %194 = vset.pattern.permute.xlu0 0
    %195 = vperm.xlu0 %194, %v189
    %v196 = vpop.permute.xlu0 %195
    %199 = vset.pattern.permute.xlu0 0
    %200 = vperm.xlu0 %199, %v190
    %v201 = vpop.permute.xlu0 %200
    %204 = vset.pattern.permute.xlu0 0
    %205 = vperm.xlu0 %204, %v191
    %v206 = vpop.permute.xlu0 %205
    %209 = vset.pattern.permute.xlu0 0
    %210 = vperm.xlu0 %209, %v192
    %v211 = vpop.permute.xlu0 %210
    %v213 = vadd.f32 %v175, %v196
    %v214 = vadd.f32 %v178, %v201
    %v215 = vadd.f32 %v183, %v206
    %v216 = vadd.f32 %v186, %v211
    %v217 = vmax.f32 %v213, 0.0
    %v218 = vmax.f32 %v214, 0.0
    %v219 = vmax.f32 %v215, 0.0
    %v220 = vmax.f32 %v216, 0.0
    %v221 = vpack.c.bf16 %v218, %v217
    %v222 = vpack.c.bf16 %v220, %v219
    %v223 = vld [vmem:[%s5] sm:$0xf]
    %v224 = vld [vmem:[%s5 + $0x4] sm:$0xf]
    %v225 = vld [vmem:[%s5 + $0x8] sm:$0xf]
    %v226 = vld [vmem:[%s5 + $0xc] sm:$0xf]
    %v227 = vld [vmem:[%s6] sm:$0xff]
    %v228 = vld [vmem:[%s6 + $0x8] sm:$0xff]
    %v229 = vld [vmem:[%s6 + $0x10] sm:$0xff]
    %v230 = vld [vmem:[%s6 + $0x18] sm:$0xff]
    %232 = vset.pattern.permute.xlu0 0
    %233 = vperm.xlu0 %232, %v227
    %v234 = vpop.permute.xlu0 %233
    %237 = vset.pattern.permute.xlu0 0
    %238 = vperm.xlu0 %237, %v228
    %v239 = vpop.permute.xlu0 %238
    %242 = vset.pattern.permute.xlu0 0
    %243 = vperm.xlu0 %242, %v229
    %v244 = vpop.permute.xlu0 %243
    %247 = vset.pattern.permute.xlu0 0
    %248 = vperm.xlu0 %247, %v230
    %v249 = vpop.permute.xlu0 %248
    %v255 = vunpack.c.l.b16 %v223
    %v256 = vunpack.c.l.b16 %v224
    %v257 = vunpack.c.l.b16 %v225
    %v258 = vunpack.c.l.b16 %v226
    %v259 = vpack.c.b16 %v256, %v255
    %v260 = vpack.c.b16 %v258, %v257
    %vm261 = vcmask 261120
    %v263 = vsel %vm261, %v259, 0
    %v266 = vsel %vm261, %v260, 0
    %268 = vmatprep.subr.bf16.mxu0 0
    %269 = vmatpush1.bf16.msra.mxu0 %v221
    %270 = vmatprep.subr.bf16.mxu0 0
    %271 = vmatpush1.bf16.msra.mxu0 %v222
    %272 = vmatprep.subr.bf16.mxu0 0
    %273 = vmatpush1.bf16.msra.mxu0 0
    %274 = vmatprep.subr.bf16.mxu0 0
    %275 = vmatpush1.bf16.msra.mxu0 0
    %276 = vmatprep.subr.bf16.mxu0 0
    %277 = vmatpush1.bf16.msra.mxu0 0
    %278 = vmatprep.subr.bf16.mxu0 0
    %279 = vmatpush1.bf16.msra.mxu0 0
    %280 = vmatprep.subr.bf16.mxu0 0
    %281 = vmatpush1.bf16.msra.mxu0 0
    %282 = vmatprep.subr.bf16.mxu0 0
    %283 = vmatpush1.bf16.msra.mxu0 0
    %284 = vmatprep.subr.bf16.mxu0 0
    %285 = vmatpush1.bf16.msra.mxu0 0
    %286 = vmatprep.subr.bf16.mxu0 0
    %287 = vmatpush1.bf16.msra.mxu0 0
    %288 = vmatprep.subr.bf16.mxu0 0
    %289 = vmatpush1.bf16.msra.mxu0 0
    %290 = vmatprep.subr.bf16.mxu0 0
    %291 = vmatpush1.bf16.msra.mxu0 0
    %292 = vmatprep.subr.bf16.mxu0 0
    %293 = vmatpush1.bf16.msra.mxu0 0
    %294 = vmatprep.subr.bf16.mxu0 0
    %295 = vmatpush1.bf16.msra.mxu0 0
    %296 = vmatprep.subr.bf16.mxu0 0
    %297 = vmatpush1.bf16.msra.mxu0 0
    %298 = vmatprep.subr.bf16.mxu0 0
    %299 = vmatpush1.bf16.msra.mxu0 0
    %300 = vmatprep.mubr.bf16.mxu0 0
    %301 = vmatmul.mubr.bf16.gmra.mrb[0].mxu0 %v263
    %v302 = vpop.f32.mrb[0].mxu0
    %v303 = vadd.f32 %v234, %v302
    %v304 = vpop.f32.mrb[0].mxu0
    %v305 = vpop.f32.mrb[0].mxu0
    %v306 = vadd.f32 %v239, %v305
    %v307 = vpop.f32.mrb[0].mxu0
    %308 = vmatprep.mubr.bf16.mxu0 0
    %309 = vmatmul.mubr.bf16.gmra.mrb[0].mxu0 %v266
    %v310 = vpop.f32.mrb[0].mxu0
    %v311 = vadd.f32 %v244, %v310
    %v312 = vpop.f32.mrb[0].mxu0
    %v313 = vpop.f32.mrb[0].mxu0
    %v314 = vadd.f32 %v249, %v313
    %v315 = vpop.f32.mrb[0].mxu0
    %316 = vdwg.mxu0
    %v317 = vmax.f32 %v303, 0.0
    %v318 = vmax.f32 %v306, 0.0
    %v319 = vmax.f32 %v311, 0.0
    %v320 = vmax.f32 %v314, 0.0
    %v321 = vld [vmem:[%s7] sm:$0xff]
    %v322 = vld [vmem:[%s7 + $0x8] sm:$0xff]
    %v323 = vld [vmem:[%s7 + $0x10] sm:$0xff]
    %v324 = vld [vmem:[%s7 + $0x18] sm:$0xff]
    %326 = vset.pattern.permute.xlu0 0
    %327 = vperm.xlu0 %326, %v321
    %v328 = vpop.permute.xlu0 %327
    %331 = vset.pattern.permute.xlu0 0
    %332 = vperm.xlu0 %331, %v322
    %v333 = vpop.permute.xlu0 %332
    %336 = vset.pattern.permute.xlu0 0
    %337 = vperm.xlu0 %336, %v323
    %v338 = vpop.permute.xlu0 %337
    %341 = vset.pattern.permute.xlu0 0
    %342 = vperm.xlu0 %341, %v324
    %v343 = vpop.permute.xlu0 %342
    %v345 = vmul.f32 %v317, %v328
    %v346 = vmul.f32 %v318, %v333
    %v347 = vmul.f32 %v319, %v338
    %v348 = vmul.f32 %v320, %v343
    %v349 = vadd.f32 %v345, %v346
    %v350 = vadd.f32 %v349, %v347
    %v351 = vadd.f32 %v350, %v348
    %v352 = vrot.slane %v351, 4
    %v353 = vadd.f32 %v351, %v352
    %v354 = vrot.slane %v353, 2
    %v355 = vadd.f32 %v353, %v354
    %v356 = vrot.slane %v355, 1
    %v357 = vadd.f32 %v355, %v356
    %v358 = vld [vmem:[#allocation2] sm:$0x1]
    %360 = vset.pattern.permute.xlu0 0
    %361 = vperm.xlu0 %360, %v358
    %v362 = vpop.permute.xlu0 %361
    %v364 = vlaneseq
    %v365 = vshrl.u32 %v364, 7
    %v366 = vsub.s32 0, %v365
    %v367 = vrot.slane %v362, %v366
    %v368 = vadd.f32 %v357, %v367
    %369 = vst [vmem:[#allocation3] sm:$0x1] %v368
    // Predicated region
    $region38: #{tpu_custom_call.1} parent=1 // pred_check
      _
    $region39: #{tpu_custom_call.1} parent=1 // pred_check_branch
      %371 = sbr.rel (0) target = $region41
    $region40: #{tpu_custom_call.1} parent=1 // pred_region
      %s373 = ssub.s32 16, 16
      %374 = vsyncadd [#allocation4], %s373
      %s376 = sshll.u32 [#allocation3], 4
      %s377 = int_to_ptr.vmem [resolvable:$true] %s376
      %379 = dma.vmem_to_hbm [thread:$0]  %s377, 16, %s9, [#allocation4]
    $region41: #{tpu_custom_call.1} parent=1 // pred_fallthru
      _
    // Predicated region
    $region42: #{tpu_custom_call.1} parent=1 // pred_check
      _
    $region43: #{tpu_custom_call.1} parent=1 // pred_check_branch
      %381 = sbr.rel (0) target = $region45
    $region44: #{tpu_custom_call.1} parent=1 // pred_region
      %382 = dma.done [#allocation4], 16
    $region45: #{tpu_custom_call.1} parent=1 // pred_fallthru
      _
    %383 = vsyncpa [#allocation4], 1

</llo_original>
